<compile_context>
chip_gen: v6e
topology: v6e:2x2x1
jax: 0.10.0
libtpu: 0.0.40
codegen_flags: <defaults>
</compile_context>

<pallas_src>
import string as _pystring

import jax
import jax.numpy as jnp
from jax.experimental import pallas as pl
from jax.experimental.pallas import tpu as pltpu

ALL_CHARACTERS = _pystring.printable
N_CHARACTERS = len(ALL_CHARACTERS)
N_PAD = 128  # embedding rows padded so the one-hot contraction dim is lane-sized


def _string_embedder_kernel(idx_ref, emb_proj_ref, w_hh_ref, h_out_ref):
    # idx_ref      : VMEM (T, 1) int32 character indices (all in [0, N_CHARACTERS))
    # emb_proj_ref : VMEM (N_PAD, 4*mem) f32 = E @ W_ih^T + (b_ih + b_hh), zero-padded rows
    # w_hh_ref     : VMEM (mem, 4*mem) f32 = W_hh^T
    # h_out_ref    : VMEM (1, mem) f32 final hidden state (== hidden.mean(dim=1))
    T = idx_ref.shape[0]
    n_pad = emb_proj_ref.shape[0]
    mem_dim = h_out_ref.shape[1]

    # 1) Gather + input projection + bias in one shot: one-hot rows against the
    #    pre-folded table -> per-step input-gate pre-activations for ALL steps.
    iota = jax.lax.broadcasted_iota(jnp.int32, (T, n_pad), 1)
    onehot = (idx_ref[...] == iota).astype(jnp.float32)          # (T, n_pad)
    gates_all = jnp.dot(onehot, emb_proj_ref[...],
                        preferred_element_type=jnp.float32)       # (T, 4*mem)

    # 2) Recurrence. W_hh^T loaded once; h/c live in vregs across the unrolled loop.
    w_hh_t = w_hh_ref[...]                                        # (mem, 4*mem)
    h = jnp.zeros((1, mem_dim), jnp.float32)
    c = jnp.zeros((1, mem_dim), jnp.float32)

    for t in range(T):
        gates = gates_all[t:t + 1, :] + jnp.dot(
            h, w_hh_t, preferred_element_type=jnp.float32)        # (1, 4*mem)
        # Full-width nonlinearities (2 EUP pushes), then cheap lane slices.
        sig = jax.nn.sigmoid(gates)
        tnh = jnp.tanh(gates)
        # PyTorch gate order: i, f, g, o
        i_g = sig[:, 0 * mem_dim:1 * mem_dim]
        f_g = sig[:, 1 * mem_dim:2 * mem_dim]
        g_g = tnh[:, 2 * mem_dim:3 * mem_dim]
        o_g = sig[:, 3 * mem_dim:4 * mem_dim]
        c = f_g * c + i_g * g_g
        h = o_g * jnp.tanh(c)

    h_out_ref[...] = h


def string_embedder_forward(char_idx_2d, emb_proj, w_hh_t):
    """char_idx_2d: (T, 1) int32 indices into ALL_CHARACTERS (T >= 1).
    emb_proj:    (N_PAD, 4*mem_dim) f32 = emb_table @ W_ih^T + (b_ih + b_hh), zero-padded.
    w_hh_t:      (mem_dim, 4*mem_dim) f32 = W_hh^T.
    Returns (hidden_mean, empty), each (1, mem_dim) f32.
    """
    T = char_idx_2d.shape[0]
    mem_dim = w_hh_t.shape[0]

    hidden = pl.pallas_call(
        _string_embedder_kernel,
        out_shape=jax.ShapeDtypeStruct((1, mem_dim), jnp.float32),
        in_specs=[
            pl.BlockSpec((T, 1), lambda: (0, 0)),                       # char indices
            pl.BlockSpec((N_PAD, 4 * mem_dim), lambda: (0, 0)),         # folded emb/proj/bias
            pl.BlockSpec((mem_dim, 4 * mem_dim), lambda: (0, 0)),       # W_hh^T
        ],
        out_specs=pl.BlockSpec((1, mem_dim), lambda: (0, 0)),
    )(char_idx_2d, emb_proj, w_hh_t)

    # empty_embedding is a compile-time constant -> produced by XLA, not the kernel.
    empty = jnp.zeros((1, mem_dim), jnp.float32)
    return hidden, empty


def embed_string(s, emb_proj, w_hh_t, mem_dim, jitted_fwd):
    """Host-side tokenization + empty-string guard, then the Pallas forward."""
    idx = [ALL_CHARACTERS.index(ch) for ch in s if ch in ALL_CHARACTERS]
    if not idx:
        # T=0 would produce zero-sized kernel shapes; return the zero state
        # (LSTM over an empty sequence from zero init state is the zero state).
        z = jnp.zeros((1, mem_dim), jnp.float32)
        return z, z
    char_idx_2d = jnp.asarray(idx, dtype=jnp.int32).reshape(-1, 1)
    return jitted_fwd(char_idx_2d, emb_proj, w_hh_t)


def _lstm_reference(x_seq, w_ih, w_hh, b_ih, b_hh):
    """Pure-JAX reference for a 1-layer, batch-1 nn.LSTM with zero init state."""
    T, mem_dim = x_seq.shape
    h = jnp.zeros((mem_dim,), jnp.float32)
    c = jnp.zeros((mem_dim,), jnp.float32)
    for t in range(T):
        gates = w_ih @ x_seq[t] + b_ih + w_hh @ h + b_hh
        i = jax.nn.sigmoid(gates[0 * mem_dim:1 * mem_dim])
        f = jax.nn.sigmoid(gates[1 * mem_dim:2 * mem_dim])
        g = jnp.tanh(gates[2 * mem_dim:3 * mem_dim])
        o = jax.nn.sigmoid(gates[3 * mem_dim:4 * mem_dim])
        c = f * c + i * g
        h = o * jnp.tanh(c)
    return h


if __name__ == "__main__":
    mem_dim = 32
    key = jax.random.PRNGKey(0)
    k_emb, k_wih, k_whh, k_bih, k_bhh = jax.random.split(key, 5)

    bound = 1.0 / (mem_dim ** 0.5)
    emb_table = jax.random.normal(k_emb, (N_CHARACTERS, mem_dim), jnp.float32)
    w_ih = jax.random.uniform(k_wih, (4 * mem_dim, mem_dim), jnp.float32, -bound, bound)
    w_hh = jax.random.uniform(k_whh, (4 * mem_dim, mem_dim), jnp.float32, -bound, bound)
    b_ih = jax.random.uniform(k_bih, (4 * mem_dim,), jnp.float32, -bound, bound)
    b_hh = jax.random.uniform(k_bhh, (4 * mem_dim,), jnp.float32, -bound, bound)

    # Eval-time constant folding (once, outside the per-call hot path):
    # fold embedding lookup, input projection and both biases into one table,
    # rows zero-padded to N_PAD so the one-hot contraction dim is 128.
    emb_proj = emb_table @ w_ih.T + (b_ih + b_hh)[None, :]        # (N_CHARACTERS, 4*mem)
    emb_proj = jnp.concatenate(
        [emb_proj, jnp.zeros((N_PAD - N_CHARACTERS, 4 * mem_dim), jnp.float32)],
        axis=0)                                                    # (N_PAD, 4*mem)
    w_hh_t = w_hh.T                                                # (mem, 4*mem)

    fwd = jax.jit(string_embedder_forward)

    input_string = "json2vec"  # seq length 8
    hidden, empty = embed_string(input_string, emb_proj, w_hh_t, mem_dim, fwd)
    jax.block_until_ready((hidden, empty))

    # Pure-JAX reference check against the original (un-folded) parameters.
    char_indices = jnp.asarray(
        [ALL_CHARACTERS.index(ch) for ch in input_string if ch in ALL_CHARACTERS],
        dtype=jnp.int32)
    x_seq = emb_table[char_indices]
    ref_h = _lstm_reference(x_seq, w_ih, w_hh, b_ih, b_hh)
    assert hidden.shape == (1, mem_dim) and empty.shape == (1, mem_dim)
    assert jnp.allclose(hidden[0], ref_h, atol=1e-4, rtol=1e-4), "hidden state mismatch"
    assert jnp.all(empty == 0.0), "empty embedding not zero"

    print("KERNEL_OK")
</pallas_src>

<mosaic_0001>
module attributes {stable_mosaic.version = 11 : i64} {
  func.func @_string_embedder_kernel(%arg0: memref<8x1xi32, #tpu.memory_space<vmem>>, %arg1: memref<128x128xf32, #tpu.memory_space<vmem>>, %arg2: memref<32x128xf32, #tpu.memory_space<vmem>>, %arg3: memref<1x32xf32, #tpu.memory_space<vmem>>) attributes {dimension_semantics = [], scalar_prefetch = 0 : i64, scratch_operands = 0 : i64, tpu.core_type = #tpu.core_type<tc>} {
    %0 = tpu.iota {dimensions = array<i32: 1>} : vector<8x128xi32>
    %c0 = arith.constant 0 : index
    %c0_0 = arith.constant 0 : index
    %1 = vector.load %arg0[%c0, %c0_0] : memref<8x1xi32, #tpu.memory_space<vmem>>, vector<8x1xi32>
    %2 = vector.broadcast %1 : vector<8x1xi32> to vector<8x128xi32>
    %3 = arith.cmpi eq, %2, %0 : vector<8x128xi32>
    %4 = arith.extui %3 : vector<8x128xi1> to vector<8x128xi32>
    %5 = arith.sitofp %4 : vector<8x128xi32> to vector<8x128xf32>
    %c0_1 = arith.constant 0 : index
    %c0_2 = arith.constant 0 : index
    %6 = vector.load %arg1[%c0_1, %c0_2] : memref<128x128xf32, #tpu.memory_space<vmem>>, vector<128x128xf32>
    %cst = arith.constant dense<0.000000e+00> : vector<8x128xf32>
    %7 = tpu.matmul %5, %6, %cst {dimension_numbers = #tpu.dot_dimension_numbers<[1], [0], [0], [1], [0, 0, 1, 1], [], []>} : vector<8x128xf32>, vector<128x128xf32>, vector<8x128xf32> -> vector<8x128xf32>
    %c0_3 = arith.constant 0 : index
    %c0_4 = arith.constant 0 : index
    %8 = vector.load %arg2[%c0_3, %c0_4] : memref<32x128xf32, #tpu.memory_space<vmem>>, vector<32x128xf32>
    %cst_5 = arith.constant 0.000000e+00 : f32
    %9 = vector.broadcast %cst_5 : f32 to vector<1x32xf32>
    %cst_6 = arith.constant 0.000000e+00 : f32
    %10 = vector.broadcast %cst_6 : f32 to vector<1x32xf32>
    %11 = vector.extract_strided_slice %7 {offsets = [0, 0], sizes = [1, 128], strides = [1, 1]} : vector<8x128xf32> to vector<1x128xf32>
    %cst_7 = arith.constant dense<0.000000e+00> : vector<1x128xf32>
    %12 = tpu.matmul %9, %8, %cst_7 {dimension_numbers = #tpu.dot_dimension_numbers<[1], [0], [0], [1], [0, 0, 1, 1], [], []>} : vector<1x32xf32>, vector<32x128xf32>, vector<1x128xf32> -> vector<1x128xf32>
    %13 = arith.addf %11, %12 : vector<1x128xf32>
    %14 = arith.negf %13 : vector<1x128xf32>
    %15 = math.exp %14 : vector<1x128xf32>
    %cst_8 = arith.constant 1.000000e+00 : f32
    %16 = vector.broadcast %cst_8 : f32 to vector<1x128xf32>
    %17 = arith.addf %16, %15 : vector<1x128xf32>
    %18 = arith.divf %16, %17 : vector<1x128xf32>
    %19 = math.tanh %13 : vector<1x128xf32>
    %20 = vector.extract_strided_slice %18 {offsets = [0, 0], sizes = [1, 32], strides = [1, 1]} : vector<1x128xf32> to vector<1x32xf32>
    %21 = vector.extract_strided_slice %18 {offsets = [0, 32], sizes = [1, 32], strides = [1, 1]} : vector<1x128xf32> to vector<1x32xf32>
    %22 = vector.extract_strided_slice %19 {offsets = [0, 64], sizes = [1, 32], strides = [1, 1]} : vector<1x128xf32> to vector<1x32xf32>
    %23 = vector.extract_strided_slice %18 {offsets = [0, 96], sizes = [1, 32], strides = [1, 1]} : vector<1x128xf32> to vector<1x32xf32>
    %24 = arith.mulf %21, %10 : vector<1x32xf32>
    %25 = arith.mulf %20, %22 : vector<1x32xf32>
    %26 = arith.addf %24, %25 : vector<1x32xf32>
    %27 = math.tanh %26 : vector<1x32xf32>
    %28 = arith.mulf %23, %27 : vector<1x32xf32>
    %29 = vector.extract_strided_slice %7 {offsets = [1, 0], sizes = [1, 128], strides = [1, 1]} : vector<8x128xf32> to vector<1x128xf32>
    %cst_9 = arith.constant dense<0.000000e+00> : vector<1x128xf32>
    %30 = tpu.matmul %28, %8, %cst_9 {dimension_numbers = #tpu.dot_dimension_numbers<[1], [0], [0], [1], [0, 0, 1, 1], [], []>} : vector<1x32xf32>, vector<32x128xf32>, vector<1x128xf32> -> vector<1x128xf32>
    %31 = arith.addf %29, %30 : vector<1x128xf32>
    %32 = arith.negf %31 : vector<1x128xf32>
    %33 = math.exp %32 : vector<1x128xf32>
    %cst_10 = arith.constant 1.000000e+00 : f32
    %34 = vector.broadcast %cst_10 : f32 to vector<1x128xf32>
    %35 = arith.addf %34, %33 : vector<1x128xf32>
    %36 = arith.divf %34, %35 : vector<1x128xf32>
    %37 = math.tanh %31 : vector<1x128xf32>
    %38 = vector.extract_strided_slice %36 {offsets = [0, 0], sizes = [1, 32], strides = [1, 1]} : vector<1x128xf32> to vector<1x32xf32>
    %39 = vector.extract_strided_slice %36 {offsets = [0, 32], sizes = [1, 32], strides = [1, 1]} : vector<1x128xf32> to vector<1x32xf32>
    %40 = vector.extract_strided_slice %37 {offsets = [0, 64], sizes = [1, 32], strides = [1, 1]} : vector<1x128xf32> to vector<1x32xf32>
    %41 = vector.extract_strided_slice %36 {offsets = [0, 96], sizes = [1, 32], strides = [1, 1]} : vector<1x128xf32> to vector<1x32xf32>
    %42 = arith.mulf %39, %26 : vector<1x32xf32>
    %43 = arith.mulf %38, %40 : vector<1x32xf32>
    %44 = arith.addf %42, %43 : vector<1x32xf32>
    %45 = math.tanh %44 : vector<1x32xf32>
    %46 = arith.mulf %41, %45 : vector<1x32xf32>
    %47 = vector.extract_strided_slice %7 {offsets = [2, 0], sizes = [1, 128], strides = [1, 1]} : vector<8x128xf32> to vector<1x128xf32>
    %cst_11 = arith.constant dense<0.000000e+00> : vector<1x128xf32>
    %48 = tpu.matmul %46, %8, %cst_11 {dimension_numbers = #tpu.dot_dimension_numbers<[1], [0], [0], [1], [0, 0, 1, 1], [], []>} : vector<1x32xf32>, vector<32x128xf32>, vector<1x128xf32> -> vector<1x128xf32>
    %49 = arith.addf %47, %48 : vector<1x128xf32>
    %50 = arith.negf %49 : vector<1x128xf32>
    %51 = math.exp %50 : vector<1x128xf32>
    %cst_12 = arith.constant 1.000000e+00 : f32
    %52 = vector.broadcast %cst_12 : f32 to vector<1x128xf32>
    %53 = arith.addf %52, %51 : vector<1x128xf32>
    %54 = arith.divf %52, %53 : vector<1x128xf32>
    %55 = math.tanh %49 : vector<1x128xf32>
    %56 = vector.extract_strided_slice %54 {offsets = [0, 0], sizes = [1, 32], strides = [1, 1]} : vector<1x128xf32> to vector<1x32xf32>
    %57 = vector.extract_strided_slice %54 {offsets = [0, 32], sizes = [1, 32], strides = [1, 1]} : vector<1x128xf32> to vector<1x32xf32>
    %58 = vector.extract_strided_slice %55 {offsets = [0, 64], sizes = [1, 32], strides = [1, 1]} : vector<1x128xf32> to vector<1x32xf32>
    %59 = vector.extract_strided_slice %54 {offsets = [0, 96], sizes = [1, 32], strides = [1, 1]} : vector<1x128xf32> to vector<1x32xf32>
    %60 = arith.mulf %57, %44 : vector<1x32xf32>
    %61 = arith.mulf %56, %58 : vector<1x32xf32>
    %62 = arith.addf %60, %61 : vector<1x32xf32>
    %63 = math.tanh %62 : vector<1x32xf32>
    %64 = arith.mulf %59, %63 : vector<1x32xf32>
    %65 = vector.extract_strided_slice %7 {offsets = [3, 0], sizes = [1, 128], strides = [1, 1]} : vector<8x128xf32> to vector<1x128xf32>
    %cst_13 = arith.constant dense<0.000000e+00> : vector<1x128xf32>
    %66 = tpu.matmul %64, %8, %cst_13 {dimension_numbers = #tpu.dot_dimension_numbers<[1], [0], [0], [1], [0, 0, 1, 1], [], []>} : vector<1x32xf32>, vector<32x128xf32>, vector<1x128xf32> -> vector<1x128xf32>
    %67 = arith.addf %65, %66 : vector<1x128xf32>
    %68 = arith.negf %67 : vector<1x128xf32>
    %69 = math.exp %68 : vector<1x128xf32>
    %cst_14 = arith.constant 1.000000e+00 : f32
    %70 = vector.broadcast %cst_14 : f32 to vector<1x128xf32>
    %71 = arith.addf %70, %69 : vector<1x128xf32>
    %72 = arith.divf %70, %71 : vector<1x128xf32>
    %73 = math.tanh %67 : vector<1x128xf32>
    %74 = vector.extract_strided_slice %72 {offsets = [0, 0], sizes = [1, 32], strides = [1, 1]} : vector<1x128xf32> to vector<1x32xf32>
    %75 = vector.extract_strided_slice %72 {offsets = [0, 32], sizes = [1, 32], strides = [1, 1]} : vector<1x128xf32> to vector<1x32xf32>
    %76 = vector.extract_strided_slice %73 {offsets = [0, 64], sizes = [1, 32], strides = [1, 1]} : vector<1x128xf32> to vector<1x32xf32>
    %77 = vector.extract_strided_slice %72 {offsets = [0, 96], sizes = [1, 32], strides = [1, 1]} : vector<1x128xf32> to vector<1x32xf32>
    %78 = arith.mulf %75, %62 : vector<1x32xf32>
    %79 = arith.mulf %74, %76 : vector<1x32xf32>
    %80 = arith.addf %78, %79 : vector<1x32xf32>
    %81 = math.tanh %80 : vector<1x32xf32>
    %82 = arith.mulf %77, %81 : vector<1x32xf32>
    %83 = vector.extract_strided_slice %7 {offsets = [4, 0], sizes = [1, 128], strides = [1, 1]} : vector<8x128xf32> to vector<1x128xf32>
    %cst_15 = arith.constant dense<0.000000e+00> : vector<1x128xf32>
    %84 = tpu.matmul %82, %8, %cst_15 {dimension_numbers = #tpu.dot_dimension_numbers<[1], [0], [0], [1], [0, 0, 1, 1], [], []>} : vector<1x32xf32>, vector<32x128xf32>, vector<1x128xf32> -> vector<1x128xf32>
    %85 = arith.addf %83, %84 : vector<1x128xf32>
    %86 = arith.negf %85 : vector<1x128xf32>
    %87 = math.exp %86 : vector<1x128xf32>
    %cst_16 = arith.constant 1.000000e+00 : f32
    %88 = vector.broadcast %cst_16 : f32 to vector<1x128xf32>
    %89 = arith.addf %88, %87 : vector<1x128xf32>
    %90 = arith.divf %88, %89 : vector<1x128xf32>
    %91 = math.tanh %85 : vector<1x128xf32>
    %92 = vector.extract_strided_slice %90 {offsets = [0, 0], sizes = [1, 32], strides = [1, 1]} : vector<1x128xf32> to vector<1x32xf32>
    %93 = vector.extract_strided_slice %90 {offsets = [0, 32], sizes = [1, 32], strides = [1, 1]} : vector<1x128xf32> to vector<1x32xf32>
    %94 = vector.extract_strided_slice %91 {offsets = [0, 64], sizes = [1, 32], strides = [1, 1]} : vector<1x128xf32> to vector<1x32xf32>
    %95 = vector.extract_strided_slice %90 {offsets = [0, 96], sizes = [1, 32], strides = [1, 1]} : vector<1x128xf32> to vector<1x32xf32>
    %96 = arith.mulf %93, %80 : vector<1x32xf32>
    %97 = arith.mulf %92, %94 : vector<1x32xf32>
    %98 = arith.addf %96, %97 : vector<1x32xf32>
    %99 = math.tanh %98 : vector<1x32xf32>
    %100 = arith.mulf %95, %99 : vector<1x32xf32>
    %101 = vector.extract_strided_slice %7 {offsets = [5, 0], sizes = [1, 128], strides = [1, 1]} : vector<8x128xf32> to vector<1x128xf32>
    %cst_17 = arith.constant dense<0.000000e+00> : vector<1x128xf32>
    %102 = tpu.matmul %100, %8, %cst_17 {dimension_numbers = #tpu.dot_dimension_numbers<[1], [0], [0], [1], [0, 0, 1, 1], [], []>} : vector<1x32xf32>, vector<32x128xf32>, vector<1x128xf32> -> vector<1x128xf32>
    %103 = arith.addf %101, %102 : vector<1x128xf32>
    %104 = arith.negf %103 : vector<1x128xf32>
    %105 = math.exp %104 : vector<1x128xf32>
    %cst_18 = arith.constant 1.000000e+00 : f32
    %106 = vector.broadcast %cst_18 : f32 to vector<1x128xf32>
    %107 = arith.addf %106, %105 : vector<1x128xf32>
    %108 = arith.divf %106, %107 : vector<1x128xf32>
    %109 = math.tanh %103 : vector<1x128xf32>
    %110 = vector.extract_strided_slice %108 {offsets = [0, 0], sizes = [1, 32], strides = [1, 1]} : vector<1x128xf32> to vector<1x32xf32>
    %111 = vector.extract_strided_slice %108 {offsets = [0, 32], sizes = [1, 32], strides = [1, 1]} : vector<1x128xf32> to vector<1x32xf32>
    %112 = vector.extract_strided_slice %109 {offsets = [0, 64], sizes = [1, 32], strides = [1, 1]} : vector<1x128xf32> to vector<1x32xf32>
    %113 = vector.extract_strided_slice %108 {offsets = [0, 96], sizes = [1, 32], strides = [1, 1]} : vector<1x128xf32> to vector<1x32xf32>
    %114 = arith.mulf %111, %98 : vector<1x32xf32>
    %115 = arith.mulf %110, %112 : vector<1x32xf32>
    %116 = arith.addf %114, %115 : vector<1x32xf32>
    %117 = math.tanh %116 : vector<1x32xf32>
    %118 = arith.mulf %113, %117 : vector<1x32xf32>
    %119 = vector.extract_strided_slice %7 {offsets = [6, 0], sizes = [1, 128], strides = [1, 1]} : vector<8x128xf32> to vector<1x128xf32>
    %cst_19 = arith.constant dense<0.000000e+00> : vector<1x128xf32>
    %120 = tpu.matmul %118, %8, %cst_19 {dimension_numbers = #tpu.dot_dimension_numbers<[1], [0], [0], [1], [0, 0, 1, 1], [], []>} : vector<1x32xf32>, vector<32x128xf32>, vector<1x128xf32> -> vector<1x128xf32>
    %121 = arith.addf %119, %120 : vector<1x128xf32>
    %122 = arith.negf %121 : vector<1x128xf32>
    %123 = math.exp %122 : vector<1x128xf32>
    %cst_20 = arith.constant 1.000000e+00 : f32
    %124 = vector.broadcast %cst_20 : f32 to vector<1x128xf32>
    %125 = arith.addf %124, %123 : vector<1x128xf32>
    %126 = arith.divf %124, %125 : vector<1x128xf32>
    %127 = math.tanh %121 : vector<1x128xf32>
    %128 = vector.extract_strided_slice %126 {offsets = [0, 0], sizes = [1, 32], strides = [1, 1]} : vector<1x128xf32> to vector<1x32xf32>
    %129 = vector.extract_strided_slice %126 {offsets = [0, 32], sizes = [1, 32], strides = [1, 1]} : vector<1x128xf32> to vector<1x32xf32>
    %130 = vector.extract_strided_slice %127 {offsets = [0, 64], sizes = [1, 32], strides = [1, 1]} : vector<1x128xf32> to vector<1x32xf32>
    %131 = vector.extract_strided_slice %126 {offsets = [0, 96], sizes = [1, 32], strides = [1, 1]} : vector<1x128xf32> to vector<1x32xf32>
    %132 = arith.mulf %129, %116 : vector<1x32xf32>
    %133 = arith.mulf %128, %130 : vector<1x32xf32>
    %134 = arith.addf %132, %133 : vector<1x32xf32>
    %135 = math.tanh %134 : vector<1x32xf32>
    %136 = arith.mulf %131, %135 : vector<1x32xf32>
    %137 = vector.extract_strided_slice %7 {offsets = [7, 0], sizes = [1, 128], strides = [1, 1]} : vector<8x128xf32> to vector<1x128xf32>
    %cst_21 = arith.constant dense<0.000000e+00> : vector<1x128xf32>
    %138 = tpu.matmul %136, %8, %cst_21 {dimension_numbers = #tpu.dot_dimension_numbers<[1], [0], [0], [1], [0, 0, 1, 1], [], []>} : vector<1x32xf32>, vector<32x128xf32>, vector<1x128xf32> -> vector<1x128xf32>
    %139 = arith.addf %137, %138 : vector<1x128xf32>
    %140 = arith.negf %139 : vector<1x128xf32>
    %141 = math.exp %140 : vector<1x128xf32>
    %cst_22 = arith.constant 1.000000e+00 : f32
    %142 = vector.broadcast %cst_22 : f32 to vector<1x128xf32>
    %143 = arith.addf %142, %141 : vector<1x128xf32>
    %144 = arith.divf %142, %143 : vector<1x128xf32>
    %145 = math.tanh %139 : vector<1x128xf32>
    %146 = vector.extract_strided_slice %144 {offsets = [0, 0], sizes = [1, 32], strides = [1, 1]} : vector<1x128xf32> to vector<1x32xf32>
    %147 = vector.extract_strided_slice %144 {offsets = [0, 32], sizes = [1, 32], strides = [1, 1]} : vector<1x128xf32> to vector<1x32xf32>
    %148 = vector.extract_strided_slice %145 {offsets = [0, 64], sizes = [1, 32], strides = [1, 1]} : vector<1x128xf32> to vector<1x32xf32>
    %149 = vector.extract_strided_slice %144 {offsets = [0, 96], sizes = [1, 32], strides = [1, 1]} : vector<1x128xf32> to vector<1x32xf32>
    %150 = arith.mulf %147, %134 : vector<1x32xf32>
    %151 = arith.mulf %146, %148 : vector<1x32xf32>
    %152 = arith.addf %150, %151 : vector<1x32xf32>
    %153 = math.tanh %152 : vector<1x32xf32>
    %154 = arith.mulf %149, %153 : vector<1x32xf32>
    %c0_23 = arith.constant 0 : index
    %c0_24 = arith.constant 0 : index
    %155 = vector.load %arg3[%c0_23, %c0_24] : memref<1x32xf32, #tpu.memory_space<vmem>>, vector<1x32xf32>
    tpu.vector_store %arg3[%c0_23, %c0_24], %154 {strides = array<i32>} : memref<1x32xf32, #tpu.memory_space<vmem>>, vector<1x32xf32>,
    return
  }
}

</mosaic_0001>

<llo_original>
// kernel: string_embedder_forward.1
$region0: #{string_embedder_forward.1}
  #allocation0 [shape = 'u32[]', space=smem, size = 0x4, offset = 0x4, fixed_abs, tag = 'smem constant byte address 0x4 - core index']
  #allocation1 [shape = 'u32[144,128]{1,0:T(1,128)}', space=vmem, size = 0x12000, scoped, tag = 'internal scratch']
  %s0 = inlined_call_operand.vmem [shape: s32[8,1], index: 0, kind: input, shape index: {}]
  %s1 = inlined_call_operand.hbm [shape: f32[128,128], index: 1, kind: input, shape index: {}]
  %s2 = inlined_call_operand.hbm [shape: f32[32,128], index: 2, kind: input, shape index: {}]
  %s3 = inlined_call_operand.hbm [shape: f32[1,32], index: 3, kind: output, shape index: {}]
  %s4 = sld [smem:[#allocation0]]
  $region30: #{string_embedder_forward.1} parent=0
    _
  %s6 = ssub.s32 1, %s4
  %s7 = scalar_select 0, %s6, %s4
  $region1: #{string_embedder_forward.1} parent=0
    #allocation2 [shape = 'u8[65536]{0}', space=vmem, size = 0x10000, scoped, tag = 'input window, operand 1, single buffered']
    #allocation3 [shape = 's32[1]{0}', space=sflag, size = 0x4, scoped, tag = 'scoped memory for string_embedder_forward.1']
    #allocation4 [shape = 's32[1]{0}', space=sflag, size = 0x4, scoped, tag = 'scoped memory for string_embedder_forward.1']
    #allocation5 [shape = 'u8[16384]{0}', space=vmem, size = 0x4000, scoped, tag = 'input window, operand 2, single buffered']
    #allocation6 [shape = 's32[1]{0}', space=sflag, size = 0x4, scoped, tag = 'scoped memory for string_embedder_forward.1']
    #allocation7 [shape = 'u8[512]{0}', space=vmem, size = 0x400, scoped, tag = 'output window, operand 0, single buffered']
    %8 = vsyncpa [#allocation3], 0
    %9 = vsyncpa [#allocation6], 0
    %10 = vsyncpa [#allocation4], 0
    // Predicated region
    $region2: #{string_embedder_forward.1} parent=1 // pred_check
      _
    $region3: #{string_embedder_forward.1} parent=1 // pred_check_branch
      %12 = sbr.rel (0) target = $region5
    $region4: #{string_embedder_forward.1} parent=1 // pred_region
      _
    $region5: #{string_embedder_forward.1} parent=1 // pred_fallthru
      _
    // Predicated region
    $region6: #{string_embedder_forward.1} parent=1 // pred_check
      _
    $region7: #{string_embedder_forward.1} parent=1 // pred_check_branch
      %14 = sbr.rel (0) target = $region9
    $region8: #{string_embedder_forward.1} parent=1 // pred_region
      %s16 = ssub.s32 2048, 2048
      %17 = vsyncadd [#allocation3], %s16
      %s18 = sshll.u32 [#allocation2], 4
      %s19 = int_to_ptr.vmem [resolvable:$true] %s18
      %24 = dma.hbm_to_vmem [thread:$0]  %s1, 2048, %s19, [#allocation3], 128, 128, 8
    $region9: #{string_embedder_forward.1} parent=1 // pred_fallthru
      _
    // Predicated region
    $region10: #{string_embedder_forward.1} parent=1 // pred_check
      _
    $region11: #{string_embedder_forward.1} parent=1 // pred_check_branch
      %26 = sbr.rel (0) target = $region13
    $region12: #{string_embedder_forward.1} parent=1 // pred_region
      %s28 = ssub.s32 512, 512
      %29 = vsyncadd [#allocation6], %s28
      %s30 = sshll.u32 [#allocation5], 4
      %s31 = int_to_ptr.vmem [resolvable:$true] %s30
      %36 = dma.hbm_to_vmem [thread:$0]  %s2, 512, %s31, [#allocation6], 128, 128, 8
    $region13: #{string_embedder_forward.1} parent=1 // pred_fallthru
      _
    // Predicated region
    $region14: #{string_embedder_forward.1} parent=1 // pred_check
      _
    $region15: #{string_embedder_forward.1} parent=1 // pred_check_branch
      %38 = sbr.rel (0) target = $region17
    $region16: #{string_embedder_forward.1} parent=1 // pred_region
      %39 = dma.done [#allocation3], 2048
    $region17: #{string_embedder_forward.1} parent=1 // pred_fallthru
      _
    // Predicated region
    $region18: #{string_embedder_forward.1} parent=1 // pred_check
      _
    $region19: #{string_embedder_forward.1} parent=1 // pred_check_branch
      %41 = sbr.rel (0) target = $region21
    $region20: #{string_embedder_forward.1} parent=1 // pred_region
      %42 = dma.done [#allocation6], 512
    $region21: #{string_embedder_forward.1} parent=1 // pred_fallthru
      _
    %v43 = vlaneseq
    %v44 = vand.u32 %v43, 127
    %v45 = vld [vmem:[%s0] sm:$0xff]
    %46 = vset.pattern.permute.xlu0 0
    %47 = vperm.xlu0 %46, %v45
    %v48 = vpop.permute.xlu0 %47
    %vm49 = vcmp.eq.s32.totalorder %v48, %v44
    %v50 = vsel %vm49, 1, 0
    %v51 = vcvt.s32.f32 %v50
    %v52 = vld [vmem:[#allocation2] sm:$0xff]
    %v53 = vld [vmem:[#allocation2 + $0x8] sm:$0xff]
    %v54 = vld [vmem:[#allocation2 + $0x10] sm:$0xff]
    %v55 = vld [vmem:[#allocation2 + $0x18] sm:$0xff]
    %v56 = vld [vmem:[#allocation2 + $0x20] sm:$0xff]
    %v57 = vld [vmem:[#allocation2 + $0x28] sm:$0xff]
    %v58 = vld [vmem:[#allocation2 + $0x30] sm:$0xff]
    %v59 = vld [vmem:[#allocation2 + $0x38] sm:$0xff]
    %v60 = vld [vmem:[#allocation2 + $0x40] sm:$0xff]
    %v61 = vld [vmem:[#allocation2 + $0x48] sm:$0xff]
    %v62 = vld [vmem:[#allocation2 + $0x50] sm:$0xff]
    %v63 = vld [vmem:[#allocation2 + $0x58] sm:$0xff]
    %v64 = vld [vmem:[#allocation2 + $0x60] sm:$0xff]
    %v65 = vld [vmem:[#allocation2 + $0x68] sm:$0xff]
    %v66 = vld [vmem:[#allocation2 + $0x70] sm:$0xff]
    %v67 = vld [vmem:[#allocation2 + $0x78] sm:$0xff]
    %68 = vmatprep.subr.mxu0 0.0
    %69 = vmatpush1.msra.mxu0 %v67
    %70 = vmatprep.subr.mxu0 0.0
    %71 = vmatpush1.msra.mxu0 %v66
    %72 = vmatprep.subr.mxu0 0.0
    %73 = vmatpush1.msra.mxu0 %v65
    %74 = vmatprep.subr.mxu0 0.0
    %75 = vmatpush1.msra.mxu0 %v64
    %76 = vmatprep.subr.mxu0 0.0
    %77 = vmatpush1.msra.mxu0 %v63
    %78 = vmatprep.subr.mxu0 0.0
    %79 = vmatpush1.msra.mxu0 %v62
    %80 = vmatprep.subr.mxu0 0.0
    %81 = vmatpush1.msra.mxu0 %v61
    %82 = vmatprep.subr.mxu0 0.0
    %83 = vmatpush1.msra.mxu0 %v60
    %84 = vmatprep.subr.mxu0 0.0
    %85 = vmatpush1.msra.mxu0 %v59
    %86 = vmatprep.subr.mxu0 0.0
    %87 = vmatpush1.msra.mxu0 %v58
    %88 = vmatprep.subr.mxu0 0.0
    %89 = vmatpush1.msra.mxu0 %v57
    %90 = vmatprep.subr.mxu0 0.0
    %91 = vmatpush1.msra.mxu0 %v56
    %92 = vmatprep.subr.mxu0 0.0
    %93 = vmatpush1.msra.mxu0 %v55
    %94 = vmatprep.subr.mxu0 0.0
    %95 = vmatpush1.msra.mxu0 %v54
    %96 = vmatprep.subr.mxu0 0.0
    %97 = vmatpush1.msra.mxu0 %v53
    %98 = vmatprep.subr.mxu0 0.0
    %99 = vmatpush1.msra.mxu0 %v52
    %100 = vmatprep.subr.mxu0 0.0
    %101 = vmatpush2.msra.mxu0 0.0
    %102 = vmatprep.subr.mxu0 0.0
    %103 = vmatpush2.msra.mxu0 0.0
    %104 = vmatprep.subr.mxu0 0.0
    %105 = vmatpush2.msra.mxu0 0.0
    %106 = vmatprep.subr.mxu0 0.0
    %107 = vmatpush2.msra.mxu0 0.0
    %108 = vmatprep.subr.mxu0 0.0
    %109 = vmatpush2.msra.mxu0 0.0
    %110 = vmatprep.subr.mxu0 0.0
    %111 = vmatpush2.msra.mxu0 0.0
    %112 = vmatprep.subr.mxu0 0.0
    %113 = vmatpush2.msra.mxu0 0.0
    %114 = vmatprep.subr.mxu0 0.0
    %115 = vmatpush2.msra.mxu0 0.0
    %116 = vmatprep.subr.mxu0 0.0
    %117 = vmatpush2.msra.mxu0 0.0
    %118 = vmatprep.subr.mxu0 0.0
    %119 = vmatpush2.msra.mxu0 0.0
    %120 = vmatprep.subr.mxu0 0.0
    %121 = vmatpush2.msra.mxu0 0.0
    %122 = vmatprep.subr.mxu0 0.0
    %123 = vmatpush2.msra.mxu0 0.0
    %124 = vmatprep.subr.mxu0 0.0
    %125 = vmatpush2.msra.mxu0 0.0
    %126 = vmatprep.subr.mxu0 0.0
    %127 = vmatpush2.msra.mxu0 0.0
    %128 = vmatprep.subr.mxu0 0.0
    %129 = vmatpush2.msra.mxu0 0.0
    %130 = vmatprep.subr.mxu0 0.0
    %131 = vmatpush2.msra.mxu0 0.0
    %132 = vmatprep.mubr.f32.mxu0 0.0
    %133 = vmatmul.mubr.f32.gmra.mxu0 %v51
    %v134 = vpop.f32.mrf.mxu0
    %v135 = vadd.f32 0.0, %v134
    %v136 = vpop.f32.mrf.mxu0
    %137 = vdwg.mxu0
    %v138 = vld [vmem:[#allocation5] sm:$0xff]
    %v139 = vld [vmem:[#allocation5 + $0x8] sm:$0xff]
    %v140 = vld [vmem:[#allocation5 + $0x10] sm:$0xff]
    %v141 = vld [vmem:[#allocation5 + $0x18] sm:$0xff]
    %vm142 = vcmask 261120
    %v144 = vsel %vm142, 0.0, 0
    %146 = vmatprep.subr.mxu0 0.0
    %147 = vmatpush1.msra.mxu0 0.0
    %148 = vmatprep.subr.mxu0 0.0
    %149 = vmatpush1.msra.mxu0 0.0
    %150 = vmatprep.subr.mxu0 0.0
    %151 = vmatpush1.msra.mxu0 0.0
    %152 = vmatprep.subr.mxu0 0.0
    %153 = vmatpush1.msra.mxu0 0.0
    %154 = vmatprep.subr.mxu0 0.0
    %155 = vmatpush1.msra.mxu0 0.0
    %156 = vmatprep.subr.mxu0 0.0
    %157 = vmatpush1.msra.mxu0 0.0
    %158 = vmatprep.subr.mxu0 0.0
    %159 = vmatpush1.msra.mxu0 0.0
    %160 = vmatprep.subr.mxu0 0.0
    %161 = vmatpush1.msra.mxu0 0.0
    %162 = vmatprep.subr.mxu0 0.0
    %163 = vmatpush1.msra.mxu0 0.0
    %164 = vmatprep.subr.mxu0 0.0
    %165 = vmatpush1.msra.mxu0 0.0
    %166 = vmatprep.subr.mxu0 0.0
    %167 = vmatpush1.msra.mxu0 0.0
    %168 = vmatprep.subr.mxu0 0.0
    %169 = vmatpush1.msra.mxu0 0.0
    %170 = vmatprep.subr.mxu0 0.0
    %171 = vmatpush1.msra.mxu0 %v141
    %172 = vmatprep.subr.mxu0 0.0
    %173 = vmatpush1.msra.mxu0 %v140
    %174 = vmatprep.subr.mxu0 0.0
    %175 = vmatpush1.msra.mxu0 %v139
    %176 = vmatprep.subr.mxu0 0.0
    %177 = vmatpush1.msra.mxu0 %v138
    %178 = vmatprep.subr.mxu0 0.0
    %179 = vmatpush2.msra.mxu0 0.0
    %180 = vmatprep.subr.mxu0 0.0
    %181 = vmatpush2.msra.mxu0 0.0
    %182 = vmatprep.subr.mxu0 0.0
    %183 = vmatpush2.msra.mxu0 0.0
    %184 = vmatprep.subr.mxu0 0.0
    %185 = vmatpush2.msra.mxu0 0.0
    %186 = vmatprep.subr.mxu0 0.0
    %187 = vmatpush2.msra.mxu0 0.0
    %188 = vmatprep.subr.mxu0 0.0
    %189 = vmatpush2.msra.mxu0 0.0
    %190 = vmatprep.subr.mxu0 0.0
    %191 = vmatpush2.msra.mxu0 0.0
    %192 = vmatprep.subr.mxu0 0.0
    %193 = vmatpush2.msra.mxu0 0.0
    %194 = vmatprep.subr.mxu0 0.0
    %195 = vmatpush2.msra.mxu0 0.0
    %196 = vmatprep.subr.mxu0 0.0
    %197 = vmatpush2.msra.mxu0 0.0
    %198 = vmatprep.subr.mxu0 0.0
    %199 = vmatpush2.msra.mxu0 0.0
    %200 = vmatprep.subr.mxu0 0.0
    %201 = vmatpush2.msra.mxu0 0.0
    %202 = vmatprep.subr.mxu0 0.0
    %203 = vmatpush2.msra.mxu0 0.0
    %204 = vmatprep.subr.mxu0 0.0
    %205 = vmatpush2.msra.mxu0 0.0
    %206 = vmatprep.subr.mxu0 0.0
    %207 = vmatpush2.msra.mxu0 0.0
    %208 = vmatprep.subr.mxu0 0.0
    %209 = vmatpush2.msra.mxu0 0.0
    %210 = vmatprep.mubr.f32.mxu0 0.0
    %211 = vmatmul.mubr.f32.gmra.mxu0 %v144
    %v212 = vpop.f32.mrf.mxu0
    %v213 = vadd.f32 0.0, %v212
    %v214 = vpop.f32.mrf.mxu0
    %215 = vdwg.mxu0
    %v216 = vadd.f32 %v135, %v213
    %v217 = vxor.u32 %v216, 2147483648
    %v218 = vmul.f32 %v217, 1.442695
    %v219 = vpow.pop %v218
    %v220 = vadd.f32 %v219, 1.0
    %v221 = vrcp.pop %v220
    %v222 = vmul.f32 1.0, %v221
    %v223 = vtanh.pop %v216
    %v224 = vmul.f32 %v222, 0.0
    %226 = vrot.lane.b32.xlu0 %v223, 64
    %v227 = vpop.permute.xlu0 %226
    %v229 = vmul.f32 %v222, %v227
    %231 = vrot.lane.b32.xlu0 %v229, 32
    %v232 = vpop.permute.xlu0 %231
    %v234 = vadd.f32 %v224, %v232
    %v235 = vtanh.pop %v234
    %237 = vrot.lane.b32.xlu0 %v235, 64
    %v238 = vpop.permute.xlu0 %237
    %v240 = vmul.f32 %v222, %v238
    %242 = vrot.lane.b32.xlu0 %v240, 32
    %v243 = vpop.permute.xlu0 %242
    %v244 = vsel %vm142, %v243, 0
    %246 = vmatprep.subr.mxu0 0.0
    %247 = vmatpush1.msra.mxu0 0.0
    %248 = vmatprep.subr.mxu0 0.0
    %249 = vmatpush1.msra.mxu0 0.0
    %250 = vmatprep.subr.mxu0 0.0
    %251 = vmatpush1.msra.mxu0 0.0
    %252 = vmatprep.subr.mxu0 0.0
    %253 = vmatpush1.msra.mxu0 0.0
    %254 = vmatprep.subr.mxu0 0.0
    %255 = vmatpush1.msra.mxu0 0.0
    %256 = vmatprep.subr.mxu0 0.0
    %257 = vmatpush1.msra.mxu0 0.0
    %258 = vmatprep.subr.mxu0 0.0
    %259 = vmatpush1.msra.mxu0 0.0
    %260 = vmatprep.subr.mxu0 0.0
    %261 = vmatpush1.msra.mxu0 0.0
    %262 = vmatprep.subr.mxu0 0.0
    %263 = vmatpush1.msra.mxu0 0.0
    %264 = vmatprep.subr.mxu0 0.0
    %265 = vmatpush1.msra.mxu0 0.0
    %266 = vmatprep.subr.mxu0 0.0
    %267 = vmatpush1.msra.mxu0 0.0
    %268 = vmatprep.subr.mxu0 0.0
    %269 = vmatpush1.msra.mxu0 0.0
    %270 = vmatprep.subr.mxu0 0.0
    %271 = vmatpush1.msra.mxu0 %v141
    %272 = vmatprep.subr.mxu0 0.0
    %273 = vmatpush1.msra.mxu0 %v140
    %274 = vmatprep.subr.mxu0 0.0
    %275 = vmatpush1.msra.mxu0 %v139
    %276 = vmatprep.subr.mxu0 0.0
    %277 = vmatpush1.msra.mxu0 %v138
    %278 = vmatprep.subr.mxu0 0.0
    %279 = vmatpush2.msra.mxu0 0.0
    %280 = vmatprep.subr.mxu0 0.0
    %281 = vmatpush2.msra.mxu0 0.0
    %282 = vmatprep.subr.mxu0 0.0
    %283 = vmatpush2.msra.mxu0 0.0
    %284 = vmatprep.subr.mxu0 0.0
    %285 = vmatpush2.msra.mxu0 0.0
    %286 = vmatprep.subr.mxu0 0.0
    %287 = vmatpush2.msra.mxu0 0.0
    %288 = vmatprep.subr.mxu0 0.0
    %289 = vmatpush2.msra.mxu0 0.0
    %290 = vmatprep.subr.mxu0 0.0
    %291 = vmatpush2.msra.mxu0 0.0
    %292 = vmatprep.subr.mxu0 0.0
    %293 = vmatpush2.msra.mxu0 0.0
    %294 = vmatprep.subr.mxu0 0.0
    %295 = vmatpush2.msra.mxu0 0.0
    %296 = vmatprep.subr.mxu0 0.0
    %297 = vmatpush2.msra.mxu0 0.0
    %298 = vmatprep.subr.mxu0 0.0
    %299 = vmatpush2.msra.mxu0 0.0
    %300 = vmatprep.subr.mxu0 0.0
    %301 = vmatpush2.msra.mxu0 0.0
    %302 = vmatprep.subr.mxu0 0.0
    %303 = vmatpush2.msra.mxu0 0.0
    %304 = vmatprep.subr.mxu0 0.0
    %305 = vmatpush2.msra.mxu0 0.0
    %306 = vmatprep.subr.mxu0 0.0
    %307 = vmatpush2.msra.mxu0 0.0
    %308 = vmatprep.subr.mxu0 0.0
    %309 = vmatpush2.msra.mxu0 0.0
    %310 = vmatprep.mubr.f32.mxu0 0.0
    %311 = vmatmul.mubr.f32.gmra.mxu0 %v244
    %v312 = vpop.f32.mrf.mxu0
    %v313 = vadd.f32 0.0, %v312
    %v314 = vpop.f32.mrf.mxu0
    %315 = vdwg.mxu0
    %v317 = vrot.slane %v313, 7
    %v319 = vadd.f32 %v135, %v317
    %v320 = vxor.u32 %v319, 2147483648
    %v321 = vmul.f32 %v320, 1.442695
    %v322 = vpow.pop %v321
    %v323 = vadd.f32 %v322, 1.0
    %v324 = vrcp.pop %v323
    %v325 = vmul.f32 1.0, %v324
    %v326 = vtanh.pop %v319
    %v328 = vrot.slane %v234, 7
    %v330 = vmul.f32 %v325, %v328
    %332 = vrot.lane.b32.xlu0 %v326, 64
    %v333 = vpop.permute.xlu0 %332
    %v335 = vmul.f32 %v325, %v333
    %337 = vrot.lane.b32.xlu0 %v335, 32
    %v338 = vpop.permute.xlu0 %337
    %v340 = vadd.f32 %v330, %v338
    %v341 = vtanh.pop %v340
    %343 = vrot.lane.b32.xlu0 %v341, 64
    %v344 = vpop.permute.xlu0 %343
    %v346 = vmul.f32 %v325, %v344
    %v348 = vrot.slane %v346, 1
    %349 = vrot.lane.b32.xlu0 %v348, 32
    %v350 = vpop.permute.xlu0 %349
    %v351 = vsel %vm142, %v350, 0
    %353 = vmatprep.subr.mxu0 0.0
    %354 = vmatpush1.msra.mxu0 0.0
    %355 = vmatprep.subr.mxu0 0.0
    %356 = vmatpush1.msra.mxu0 0.0
    %357 = vmatprep.subr.mxu0 0.0
    %358 = vmatpush1.msra.mxu0 0.0
    %359 = vmatprep.subr.mxu0 0.0
    %360 = vmatpush1.msra.mxu0 0.0
    %361 = vmatprep.subr.mxu0 0.0
    %362 = vmatpush1.msra.mxu0 0.0
    %363 = vmatprep.subr.mxu0 0.0
    %364 = vmatpush1.msra.mxu0 0.0
    %365 = vmatprep.subr.mxu0 0.0
    %366 = vmatpush1.msra.mxu0 0.0
    %367 = vmatprep.subr.mxu0 0.0
    %368 = vmatpush1.msra.mxu0 0.0
    %369 = vmatprep.subr.mxu0 0.0
    %370 = vmatpush1.msra.mxu0 0.0
    %371 = vmatprep.subr.mxu0 0.0
    %372 = vmatpush1.msra.mxu0 0.0
    %373 = vmatprep.subr.mxu0 0.0
    %374 = vmatpush1.msra.mxu0 0.0
    %375 = vmatprep.subr.mxu0 0.0
    %376 = vmatpush1.msra.mxu0 0.0
    %377 = vmatprep.subr.mxu0 0.0
    %378 = vmatpush1.msra.mxu0 %v141
    %379 = vmatprep.subr.mxu0 0.0
    %380 = vmatpush1.msra.mxu0 %v140
    %381 = vmatprep.subr.mxu0 0.0
    %382 = vmatpush1.msra.mxu0 %v139
    %383 = vmatprep.subr.mxu0 0.0
    %384 = vmatpush1.msra.mxu0 %v138
    %385 = vmatprep.subr.mxu0 0.0
    %386 = vmatpush2.msra.mxu0 0.0
    %387 = vmatprep.subr.mxu0 0.0
    %388 = vmatpush2.msra.mxu0 0.0
    %389 = vmatprep.subr.mxu0 0.0
    %390 = vmatpush2.msra.mxu0 0.0
    %391 = vmatprep.subr.mxu0 0.0
    %392 = vmatpush2.msra.mxu0 0.0
    %393 = vmatprep.subr.mxu0 0.0
    %394 = vmatpush2.msra.mxu0 0.0
    %395 = vmatprep.subr.mxu0 0.0
    %396 = vmatpush2.msra.mxu0 0.0
    %397 = vmatprep.subr.mxu0 0.0
    %398 = vmatpush2.msra.mxu0 0.0
    %399 = vmatprep.subr.mxu0 0.0
    %400 = vmatpush2.msra.mxu0 0.0
    %401 = vmatprep.subr.mxu0 0.0
    %402 = vmatpush2.msra.mxu0 0.0
    %403 = vmatprep.subr.mxu0 0.0
    %404 = vmatpush2.msra.mxu0 0.0
    %405 = vmatprep.subr.mxu0 0.0
    %406 = vmatpush2.msra.mxu0 0.0
    %407 = vmatprep.subr.mxu0 0.0
    %408 = vmatpush2.msra.mxu0 0.0
    %409 = vmatprep.subr.mxu0 0.0
    %410 = vmatpush2.msra.mxu0 0.0
    %411 = vmatprep.subr.mxu0 0.0
    %412 = vmatpush2.msra.mxu0 0.0
    %413 = vmatprep.subr.mxu0 0.0
    %414 = vmatpush2.msra.mxu0 0.0
    %415 = vmatprep.subr.mxu0 0.0
    %416 = vmatpush2.msra.mxu0 0.0
    %417 = vmatprep.mubr.f32.mxu0 0.0
    %418 = vmatmul.mubr.f32.gmra.mxu0 %v351
    %v419 = vpop.f32.mrf.mxu0
    %v420 = vadd.f32 0.0, %v419
    %v421 = vpop.f32.mrf.mxu0
    %422 = vdwg.mxu0
    %v424 = vrot.slane %v420, 6
    %v426 = vadd.f32 %v135, %v424
    %v427 = vxor.u32 %v426, 2147483648
    %v428 = vmul.f32 %v427, 1.442695
    %v429 = vpow.pop %v428
    %v430 = vadd.f32 %v429, 1.0
    %v431 = vrcp.pop %v430
    %v432 = vmul.f32 1.0, %v431
    %v433 = vtanh.pop %v426
    %v435 = vrot.slane %v340, 7
    %v437 = vmul.f32 %v432, %v435
    %439 = vrot.lane.b32.xlu0 %v433, 64
    %v440 = vpop.permute.xlu0 %439
    %v442 = vmul.f32 %v432, %v440
    %444 = vrot.lane.b32.xlu0 %v442, 32
    %v445 = vpop.permute.xlu0 %444
    %v447 = vadd.f32 %v437, %v445
    %v448 = vtanh.pop %v447
    %450 = vrot.lane.b32.xlu0 %v448, 64
    %v451 = vpop.permute.xlu0 %450
    %v453 = vmul.f32 %v432, %v451
    %v455 = vrot.slane %v453, 2
    %456 = vrot.lane.b32.xlu0 %v455, 32
    %v457 = vpop.permute.xlu0 %456
    %v458 = vsel %vm142, %v457, 0
    %460 = vmatprep.subr.mxu0 0.0
    %461 = vmatpush1.msra.mxu0 0.0
    %462 = vmatprep.subr.mxu0 0.0
    %463 = vmatpush1.msra.mxu0 0.0
    %464 = vmatprep.subr.mxu0 0.0
    %465 = vmatpush1.msra.mxu0 0.0
    %466 = vmatprep.subr.mxu0 0.0
    %467 = vmatpush1.msra.mxu0 0.0
    %468 = vmatprep.subr.mxu0 0.0
    %469 = vmatpush1.msra.mxu0 0.0
    %470 = vmatprep.subr.mxu0 0.0
    %471 = vmatpush1.msra.mxu0 0.0
    %472 = vmatprep.subr.mxu0 0.0
    %473 = vmatpush1.msra.mxu0 0.0
    %474 = vmatprep.subr.mxu0 0.0
    %475 = vmatpush1.msra.mxu0 0.0
    %476 = vmatprep.subr.mxu0 0.0
    %477 = vmatpush1.msra.mxu0 0.0
    %478 = vmatprep.subr.mxu0 0.0
    %479 = vmatpush1.msra.mxu0 0.0
    %480 = vmatprep.subr.mxu0 0.0
    %481 = vmatpush1.msra.mxu0 0.0
    %482 = vmatprep.subr.mxu0 0.0
    %483 = vmatpush1.msra.mxu0 0.0
    %484 = vmatprep.subr.mxu0 0.0
    %485 = vmatpush1.msra.mxu0 %v141
    %486 = vmatprep.subr.mxu0 0.0
    %487 = vmatpush1.msra.mxu0 %v140
    %488 = vmatprep.subr.mxu0 0.0
    %489 = vmatpush1.msra.mxu0 %v139
    %490 = vmatprep.subr.mxu0 0.0
    %491 = vmatpush1.msra.mxu0 %v138
    %492 = vmatprep.subr.mxu0 0.0
    %493 = vmatpush2.msra.mxu0 0.0
    %494 = vmatprep.subr.mxu0 0.0
    %495 = vmatpush2.msra.mxu0 0.0
    %496 = vmatprep.subr.mxu0 0.0
    %497 = vmatpush2.msra.mxu0 0.0
    %498 = vmatprep.subr.mxu0 0.0
    %499 = vmatpush2.msra.mxu0 0.0
    %500 = vmatprep.subr.mxu0 0.0
    %501 = vmatpush2.msra.mxu0 0.0
    %502 = vmatprep.subr.mxu0 0.0
    %503 = vmatpush2.msra.mxu0 0.0
    %504 = vmatprep.subr.mxu0 0.0
    %505 = vmatpush2.msra.mxu0 0.0
    %506 = vmatprep.subr.mxu0 0.0
    %507 = vmatpush2.msra.mxu0 0.0
    %508 = vmatprep.subr.mxu0 0.0
    %509 = vmatpush2.msra.mxu0 0.0
    %510 = vmatprep.subr.mxu0 0.0
    %511 = vmatpush2.msra.mxu0 0.0
    %512 = vmatprep.subr.mxu0 0.0
    %513 = vmatpush2.msra.mxu0 0.0
    %514 = vmatprep.subr.mxu0 0.0
    %515 = vmatpush2.msra.mxu0 0.0
    %516 = vmatprep.subr.mxu0 0.0
    %517 = vmatpush2.msra.mxu0 0.0
    %518 = vmatprep.subr.mxu0 0.0
    %519 = vmatpush2.msra.mxu0 0.0
    %520 = vmatprep.subr.mxu0 0.0
    %521 = vmatpush2.msra.mxu0 0.0
    %522 = vmatprep.subr.mxu0 0.0
    %523 = vmatpush2.msra.mxu0 0.0
    %524 = vmatprep.mubr.f32.mxu0 0.0
    %525 = vmatmul.mubr.f32.gmra.mxu0 %v458
    %v526 = vpop.f32.mrf.mxu0
    %v527 = vadd.f32 0.0, %v526
    %v528 = vpop.f32.mrf.mxu0
    %529 = vdwg.mxu0
    %v531 = vrot.slane %v527, 5
    %v533 = vadd.f32 %v135, %v531
    %v534 = vxor.u32 %v533, 2147483648
    %v535 = vmul.f32 %v534, 1.442695
    %v536 = vpow.pop %v535
    %v537 = vadd.f32 %v536, 1.0
    %v538 = vrcp.pop %v537
    %v539 = vmul.f32 1.0, %v538
    %v540 = vtanh.pop %v533
    %v542 = vrot.slane %v447, 7
    %v544 = vmul.f32 %v539, %v542
    %546 = vrot.lane.b32.xlu0 %v540, 64
    %v547 = vpop.permute.xlu0 %546
    %v549 = vmul.f32 %v539, %v547
    %551 = vrot.lane.b32.xlu0 %v549, 32
    %v552 = vpop.permute.xlu0 %551
    %v554 = vadd.f32 %v544, %v552
    %v555 = vtanh.pop %v554
    %557 = vrot.lane.b32.xlu0 %v555, 64
    %v558 = vpop.permute.xlu0 %557
    %v560 = vmul.f32 %v539, %v558
    %v562 = vrot.slane %v560, 3
    %563 = vrot.lane.b32.xlu0 %v562, 32
    %v564 = vpop.permute.xlu0 %563
    %v565 = vsel %vm142, %v564, 0
    %567 = vmatprep.subr.mxu0 0.0
    %568 = vmatpush1.msra.mxu0 0.0
    %569 = vmatprep.subr.mxu0 0.0
    %570 = vmatpush1.msra.mxu0 0.0
    %571 = vmatprep.subr.mxu0 0.0
    %572 = vmatpush1.msra.mxu0 0.0
    %573 = vmatprep.subr.mxu0 0.0
    %574 = vmatpush1.msra.mxu0 0.0
    %575 = vmatprep.subr.mxu0 0.0
    %576 = vmatpush1.msra.mxu0 0.0
    %577 = vmatprep.subr.mxu0 0.0
    %578 = vmatpush1.msra.mxu0 0.0
    %579 = vmatprep.subr.mxu0 0.0
    %580 = vmatpush1.msra.mxu0 0.0
    %581 = vmatprep.subr.mxu0 0.0
    %582 = vmatpush1.msra.mxu0 0.0
    %583 = vmatprep.subr.mxu0 0.0
    %584 = vmatpush1.msra.mxu0 0.0
    %585 = vmatprep.subr.mxu0 0.0
    %586 = vmatpush1.msra.mxu0 0.0
    %587 = vmatprep.subr.mxu0 0.0
    %588 = vmatpush1.msra.mxu0 0.0
    %589 = vmatprep.subr.mxu0 0.0
    %590 = vmatpush1.msra.mxu0 0.0
    %591 = vmatprep.subr.mxu0 0.0
    %592 = vmatpush1.msra.mxu0 %v141
    %593 = vmatprep.subr.mxu0 0.0
    %594 = vmatpush1.msra.mxu0 %v140
    %595 = vmatprep.subr.mxu0 0.0
    %596 = vmatpush1.msra.mxu0 %v139
    %597 = vmatprep.subr.mxu0 0.0
    %598 = vmatpush1.msra.mxu0 %v138
    %599 = vmatprep.subr.mxu0 0.0
    %600 = vmatpush2.msra.mxu0 0.0
    %601 = vmatprep.subr.mxu0 0.0
    %602 = vmatpush2.msra.mxu0 0.0
    %603 = vmatprep.subr.mxu0 0.0
    %604 = vmatpush2.msra.mxu0 0.0
    %605 = vmatprep.subr.mxu0 0.0
    %606 = vmatpush2.msra.mxu0 0.0
    %607 = vmatprep.subr.mxu0 0.0
    %608 = vmatpush2.msra.mxu0 0.0
    %609 = vmatprep.subr.mxu0 0.0
    %610 = vmatpush2.msra.mxu0 0.0
    %611 = vmatprep.subr.mxu0 0.0
    %612 = vmatpush2.msra.mxu0 0.0
    %613 = vmatprep.subr.mxu0 0.0
    %614 = vmatpush2.msra.mxu0 0.0
    %615 = vmatprep.subr.mxu0 0.0
    %616 = vmatpush2.msra.mxu0 0.0
    %617 = vmatprep.subr.mxu0 0.0
    %618 = vmatpush2.msra.mxu0 0.0
    %619 = vmatprep.subr.mxu0 0.0
    %620 = vmatpush2.msra.mxu0 0.0
    %621 = vmatprep.subr.mxu0 0.0
    %622 = vmatpush2.msra.mxu0 0.0
    %623 = vmatprep.subr.mxu0 0.0
    %624 = vmatpush2.msra.mxu0 0.0
    %625 = vmatprep.subr.mxu0 0.0
    %626 = vmatpush2.msra.mxu0 0.0
    %627 = vmatprep.subr.mxu0 0.0
    %628 = vmatpush2.msra.mxu0 0.0
    %629 = vmatprep.subr.mxu0 0.0
    %630 = vmatpush2.msra.mxu0 0.0
    %631 = vmatprep.mubr.f32.mxu0 0.0
    %632 = vmatmul.mubr.f32.gmra.mxu0 %v565
    %v633 = vpop.f32.mrf.mxu0
    %v634 = vadd.f32 0.0, %v633
    %v635 = vpop.f32.mrf.mxu0
    %636 = vdwg.mxu0
    %v638 = vrot.slane %v634, 4
    %v640 = vadd.f32 %v135, %v638
    %v641 = vxor.u32 %v640, 2147483648
    %v642 = vmul.f32 %v641, 1.442695
    %v643 = vpow.pop %v642
    %v644 = vadd.f32 %v643, 1.0
    %v645 = vrcp.pop %v644
    %v646 = vmul.f32 1.0, %v645
    %v647 = vtanh.pop %v640
    %v649 = vrot.slane %v554, 7
    %v651 = vmul.f32 %v646, %v649
    %653 = vrot.lane.b32.xlu0 %v647, 64
    %v654 = vpop.permute.xlu0 %653
    %v656 = vmul.f32 %v646, %v654
    %658 = vrot.lane.b32.xlu0 %v656, 32
    %v659 = vpop.permute.xlu0 %658
    %v661 = vadd.f32 %v651, %v659
    %v662 = vtanh.pop %v661
    %664 = vrot.lane.b32.xlu0 %v662, 64
    %v665 = vpop.permute.xlu0 %664
    %v667 = vmul.f32 %v646, %v665
    %v669 = vrot.slane %v667, 4
    %670 = vrot.lane.b32.xlu0 %v669, 32
    %v671 = vpop.permute.xlu0 %670
    %v672 = vsel %vm142, %v671, 0
    %674 = vmatprep.subr.mxu0 0.0
    %675 = vmatpush1.msra.mxu0 0.0
    %676 = vmatprep.subr.mxu0 0.0
    %677 = vmatpush1.msra.mxu0 0.0
    %678 = vmatprep.subr.mxu0 0.0
    %679 = vmatpush1.msra.mxu0 0.0
    %680 = vmatprep.subr.mxu0 0.0
    %681 = vmatpush1.msra.mxu0 0.0
    %682 = vmatprep.subr.mxu0 0.0
    %683 = vmatpush1.msra.mxu0 0.0
    %684 = vmatprep.subr.mxu0 0.0
    %685 = vmatpush1.msra.mxu0 0.0
    %686 = vmatprep.subr.mxu0 0.0
    %687 = vmatpush1.msra.mxu0 0.0
    %688 = vmatprep.subr.mxu0 0.0
    %689 = vmatpush1.msra.mxu0 0.0
    %690 = vmatprep.subr.mxu0 0.0
    %691 = vmatpush1.msra.mxu0 0.0
    %692 = vmatprep.subr.mxu0 0.0
    %693 = vmatpush1.msra.mxu0 0.0
    %694 = vmatprep.subr.mxu0 0.0
    %695 = vmatpush1.msra.mxu0 0.0
    %696 = vmatprep.subr.mxu0 0.0
    %697 = vmatpush1.msra.mxu0 0.0
    %698 = vmatprep.subr.mxu0 0.0
    %699 = vmatpush1.msra.mxu0 %v141
    %700 = vmatprep.subr.mxu0 0.0
    %701 = vmatpush1.msra.mxu0 %v140
    %702 = vmatprep.subr.mxu0 0.0
    %703 = vmatpush1.msra.mxu0 %v139
    %704 = vmatprep.subr.mxu0 0.0
    %705 = vmatpush1.msra.mxu0 %v138
    %706 = vmatprep.subr.mxu0 0.0
    %707 = vmatpush2.msra.mxu0 0.0
    %708 = vmatprep.subr.mxu0 0.0
    %709 = vmatpush2.msra.mxu0 0.0
    %710 = vmatprep.subr.mxu0 0.0
    %711 = vmatpush2.msra.mxu0 0.0
    %712 = vmatprep.subr.mxu0 0.0
    %713 = vmatpush2.msra.mxu0 0.0
    %714 = vmatprep.subr.mxu0 0.0
    %715 = vmatpush2.msra.mxu0 0.0
    %716 = vmatprep.subr.mxu0 0.0
    %717 = vmatpush2.msra.mxu0 0.0
    %718 = vmatprep.subr.mxu0 0.0
    %719 = vmatpush2.msra.mxu0 0.0
    %720 = vmatprep.subr.mxu0 0.0
    %721 = vmatpush2.msra.mxu0 0.0
    %722 = vmatprep.subr.mxu0 0.0
    %723 = vmatpush2.msra.mxu0 0.0
    %724 = vmatprep.subr.mxu0 0.0
    %725 = vmatpush2.msra.mxu0 0.0
    %726 = vmatprep.subr.mxu0 0.0
    %727 = vmatpush2.msra.mxu0 0.0
    %728 = vmatprep.subr.mxu0 0.0
    %729 = vmatpush2.msra.mxu0 0.0
    %730 = vmatprep.subr.mxu0 0.0
    %731 = vmatpush2.msra.mxu0 0.0
    %732 = vmatprep.subr.mxu0 0.0
    %733 = vmatpush2.msra.mxu0 0.0
    %734 = vmatprep.subr.mxu0 0.0
    %735 = vmatpush2.msra.mxu0 0.0
    %736 = vmatprep.subr.mxu0 0.0
    %737 = vmatpush2.msra.mxu0 0.0
    %738 = vmatprep.mubr.f32.mxu0 0.0
    %739 = vmatmul.mubr.f32.gmra.mxu0 %v672
    %v740 = vpop.f32.mrf.mxu0
    %v741 = vadd.f32 0.0, %v740
    %v742 = vpop.f32.mrf.mxu0
    %743 = vdwg.mxu0
    %v745 = vrot.slane %v741, 3
    %v747 = vadd.f32 %v135, %v745
    %v748 = vxor.u32 %v747, 2147483648
    %v749 = vmul.f32 %v748, 1.442695
    %v750 = vpow.pop %v749
    %v751 = vadd.f32 %v750, 1.0
    %v752 = vrcp.pop %v751
    %v753 = vmul.f32 1.0, %v752
    %v754 = vtanh.pop %v747
    %v756 = vrot.slane %v661, 7
    %v758 = vmul.f32 %v753, %v756
    %760 = vrot.lane.b32.xlu0 %v754, 64
    %v761 = vpop.permute.xlu0 %760
    %v763 = vmul.f32 %v753, %v761
    %765 = vrot.lane.b32.xlu0 %v763, 32
    %v766 = vpop.permute.xlu0 %765
    %v768 = vadd.f32 %v758, %v766
    %v769 = vtanh.pop %v768
    %771 = vrot.lane.b32.xlu0 %v769, 64
    %v772 = vpop.permute.xlu0 %771
    %v774 = vmul.f32 %v753, %v772
    %v776 = vrot.slane %v774, 5
    %777 = vrot.lane.b32.xlu0 %v776, 32
    %v778 = vpop.permute.xlu0 %777
    %v779 = vsel %vm142, %v778, 0
    %781 = vmatprep.subr.mxu0 0.0
    %782 = vmatpush1.msra.mxu0 0.0
    %783 = vmatprep.subr.mxu0 0.0
    %784 = vmatpush1.msra.mxu0 0.0
    %785 = vmatprep.subr.mxu0 0.0
    %786 = vmatpush1.msra.mxu0 0.0
    %787 = vmatprep.subr.mxu0 0.0
    %788 = vmatpush1.msra.mxu0 0.0
    %789 = vmatprep.subr.mxu0 0.0
    %790 = vmatpush1.msra.mxu0 0.0
    %791 = vmatprep.subr.mxu0 0.0
    %792 = vmatpush1.msra.mxu0 0.0
    %793 = vmatprep.subr.mxu0 0.0
    %794 = vmatpush1.msra.mxu0 0.0
    %795 = vmatprep.subr.mxu0 0.0
    %796 = vmatpush1.msra.mxu0 0.0
    %797 = vmatprep.subr.mxu0 0.0
    %798 = vmatpush1.msra.mxu0 0.0
    %799 = vmatprep.subr.mxu0 0.0
    %800 = vmatpush1.msra.mxu0 0.0
    %801 = vmatprep.subr.mxu0 0.0
    %802 = vmatpush1.msra.mxu0 0.0
    %803 = vmatprep.subr.mxu0 0.0
    %804 = vmatpush1.msra.mxu0 0.0
    %805 = vmatprep.subr.mxu0 0.0
    %806 = vmatpush1.msra.mxu0 %v141
    %807 = vmatprep.subr.mxu0 0.0
    %808 = vmatpush1.msra.mxu0 %v140
    %809 = vmatprep.subr.mxu0 0.0
    %810 = vmatpush1.msra.mxu0 %v139
    %811 = vmatprep.subr.mxu0 0.0
    %812 = vmatpush1.msra.mxu0 %v138
    %813 = vmatprep.subr.mxu0 0.0
    %814 = vmatpush2.msra.mxu0 0.0
    %815 = vmatprep.subr.mxu0 0.0
    %816 = vmatpush2.msra.mxu0 0.0
    %817 = vmatprep.subr.mxu0 0.0
    %818 = vmatpush2.msra.mxu0 0.0
    %819 = vmatprep.subr.mxu0 0.0
    %820 = vmatpush2.msra.mxu0 0.0
    %821 = vmatprep.subr.mxu0 0.0
    %822 = vmatpush2.msra.mxu0 0.0
    %823 = vmatprep.subr.mxu0 0.0
    %824 = vmatpush2.msra.mxu0 0.0
    %825 = vmatprep.subr.mxu0 0.0
    %826 = vmatpush2.msra.mxu0 0.0
    %827 = vmatprep.subr.mxu0 0.0
    %828 = vmatpush2.msra.mxu0 0.0
    %829 = vmatprep.subr.mxu0 0.0
    %830 = vmatpush2.msra.mxu0 0.0
    %831 = vmatprep.subr.mxu0 0.0
    %832 = vmatpush2.msra.mxu0 0.0
    %833 = vmatprep.subr.mxu0 0.0
    %834 = vmatpush2.msra.mxu0 0.0
    %835 = vmatprep.subr.mxu0 0.0
    %836 = vmatpush2.msra.mxu0 0.0
    %837 = vmatprep.subr.mxu0 0.0
    %838 = vmatpush2.msra.mxu0 0.0
    %839 = vmatprep.subr.mxu0 0.0
    %840 = vmatpush2.msra.mxu0 0.0
    %841 = vmatprep.subr.mxu0 0.0
    %842 = vmatpush2.msra.mxu0 0.0
    %843 = vmatprep.subr.mxu0 0.0
    %844 = vmatpush2.msra.mxu0 0.0
    %845 = vmatprep.mubr.f32.mxu0 0.0
    %846 = vmatmul.mubr.f32.gmra.mxu0 %v779
    %v847 = vpop.f32.mrf.mxu0
    %v848 = vadd.f32 0.0, %v847
    %v849 = vpop.f32.mrf.mxu0
    %850 = vdwg.mxu0
    %v852 = vrot.slane %v848, 2
    %v854 = vadd.f32 %v135, %v852
    %v855 = vxor.u32 %v854, 2147483648
    %v856 = vmul.f32 %v855, 1.442695
    %v857 = vpow.pop %v856
    %v858 = vadd.f32 %v857, 1.0
    %v859 = vrcp.pop %v858
    %v860 = vmul.f32 1.0, %v859
    %v861 = vtanh.pop %v854
    %v863 = vrot.slane %v768, 7
    %v865 = vmul.f32 %v860, %v863
    %867 = vrot.lane.b32.xlu0 %v861, 64
    %v868 = vpop.permute.xlu0 %867
    %v870 = vmul.f32 %v860, %v868
    %872 = vrot.lane.b32.xlu0 %v870, 32
    %v873 = vpop.permute.xlu0 %872
    %v875 = vadd.f32 %v865, %v873
    %v876 = vtanh.pop %v875
    %878 = vrot.lane.b32.xlu0 %v876, 64
    %v879 = vpop.permute.xlu0 %878
    %v881 = vmul.f32 %v860, %v879
    %v883 = vrot.slane %v881, 6
    %884 = vrot.lane.b32.xlu0 %v883, 32
    %v885 = vpop.permute.xlu0 %884
    %v886 = vsel %vm142, %v885, 0
    %888 = vmatprep.subr.mxu0 0.0
    %889 = vmatpush1.msra.mxu0 0.0
    %890 = vmatprep.subr.mxu0 0.0
    %891 = vmatpush1.msra.mxu0 0.0
    %892 = vmatprep.subr.mxu0 0.0
    %893 = vmatpush1.msra.mxu0 0.0
    %894 = vmatprep.subr.mxu0 0.0
    %895 = vmatpush1.msra.mxu0 0.0
    %896 = vmatprep.subr.mxu0 0.0
    %897 = vmatpush1.msra.mxu0 0.0
    %898 = vmatprep.subr.mxu0 0.0
    %899 = vmatpush1.msra.mxu0 0.0
    %900 = vmatprep.subr.mxu0 0.0
    %901 = vmatpush1.msra.mxu0 0.0
    %902 = vmatprep.subr.mxu0 0.0
    %903 = vmatpush1.msra.mxu0 0.0
    %904 = vmatprep.subr.mxu0 0.0
    %905 = vmatpush1.msra.mxu0 0.0
    %906 = vmatprep.subr.mxu0 0.0
    %907 = vmatpush1.msra.mxu0 0.0
    %908 = vmatprep.subr.mxu0 0.0
    %909 = vmatpush1.msra.mxu0 0.0
    %910 = vmatprep.subr.mxu0 0.0
    %911 = vmatpush1.msra.mxu0 0.0
    %912 = vmatprep.subr.mxu0 0.0
    %913 = vmatpush1.msra.mxu0 %v141
    %914 = vmatprep.subr.mxu0 0.0
    %915 = vmatpush1.msra.mxu0 %v140
    %916 = vmatprep.subr.mxu0 0.0
    %917 = vmatpush1.msra.mxu0 %v139
    %918 = vmatprep.subr.mxu0 0.0
    %919 = vmatpush1.msra.mxu0 %v138
    %920 = vmatprep.subr.mxu0 0.0
    %921 = vmatpush2.msra.mxu0 0.0
    %922 = vmatprep.subr.mxu0 0.0
    %923 = vmatpush2.msra.mxu0 0.0
    %924 = vmatprep.subr.mxu0 0.0
    %925 = vmatpush2.msra.mxu0 0.0
    %926 = vmatprep.subr.mxu0 0.0
    %927 = vmatpush2.msra.mxu0 0.0
    %928 = vmatprep.subr.mxu0 0.0
    %929 = vmatpush2.msra.mxu0 0.0
    %930 = vmatprep.subr.mxu0 0.0
    %931 = vmatpush2.msra.mxu0 0.0
    %932 = vmatprep.subr.mxu0 0.0
    %933 = vmatpush2.msra.mxu0 0.0
    %934 = vmatprep.subr.mxu0 0.0
    %935 = vmatpush2.msra.mxu0 0.0
    %936 = vmatprep.subr.mxu0 0.0
    %937 = vmatpush2.msra.mxu0 0.0
    %938 = vmatprep.subr.mxu0 0.0
    %939 = vmatpush2.msra.mxu0 0.0
    %940 = vmatprep.subr.mxu0 0.0
    %941 = vmatpush2.msra.mxu0 0.0
    %942 = vmatprep.subr.mxu0 0.0
    %943 = vmatpush2.msra.mxu0 0.0
    %944 = vmatprep.subr.mxu0 0.0
    %945 = vmatpush2.msra.mxu0 0.0
    %946 = vmatprep.subr.mxu0 0.0
    %947 = vmatpush2.msra.mxu0 0.0
    %948 = vmatprep.subr.mxu0 0.0
    %949 = vmatpush2.msra.mxu0 0.0
    %950 = vmatprep.subr.mxu0 0.0
    %951 = vmatpush2.msra.mxu0 0.0
    %952 = vmatprep.mubr.f32.mxu0 0.0
    %953 = vmatmul.mubr.f32.gmra.mxu0 %v886
    %v954 = vpop.f32.mrf.mxu0
    %v955 = vadd.f32 0.0, %v954
    %v956 = vpop.f32.mrf.mxu0
    %957 = vdwg.mxu0
    %v959 = vrot.slane %v955, 1
    %v961 = vadd.f32 %v135, %v959
    %v962 = vxor.u32 %v961, 2147483648
    %v963 = vmul.f32 %v962, 1.442695
    %v964 = vpow.pop %v963
    %v965 = vadd.f32 %v964, 1.0
    %v966 = vrcp.pop %v965
    %v967 = vmul.f32 1.0, %v966
    %v968 = vtanh.pop %v961
    %v970 = vrot.slane %v875, 7
    %v972 = vmul.f32 %v967, %v970
    %974 = vrot.lane.b32.xlu0 %v968, 64
    %v975 = vpop.permute.xlu0 %974
    %v977 = vmul.f32 %v967, %v975
    %979 = vrot.lane.b32.xlu0 %v977, 32
    %v980 = vpop.permute.xlu0 %979
    %v982 = vadd.f32 %v972, %v980
    %v983 = vtanh.pop %v982
    %985 = vrot.lane.b32.xlu0 %v983, 64
    %v986 = vpop.permute.xlu0 %985
    %v988 = vmul.f32 %v967, %v986
    %990 = vrot.lane.b32.xlu0 %v988, 32
    %v991 = vpop.permute.xlu0 %990
    %vm993 = vcmask 261127
    %994 = vst.msk [vmem:[#allocation7 - $0x7] sm:$0x80] %vm993, %v991
    // Predicated region
    $region22: #{string_embedder_forward.1} parent=1 // pred_check
      _
    $region23: #{string_embedder_forward.1} parent=1 // pred_check_branch
      %996 = sbr.rel (0) target = $region25
    $region24: #{string_embedder_forward.1} parent=1 // pred_region
      %s998 = ssub.s32 16, 16
      %999 = vsyncadd [#allocation4], %s998
      %s1001 = sshll.u32 [#allocation7], 4
      %s1002 = int_to_ptr.vmem [resolvable:$true] %s1001
      %1004 = dma.vmem_to_hbm [thread:$0]  %s1002, 16, %s3, [#allocation4]
    $region25: #{string_embedder_forward.1} parent=1 // pred_fallthru
      _
    // Predicated region
    $region26: #{string_embedder_forward.1} parent=1 // pred_check
      _
    $region27: #{string_embedder_forward.1} parent=1 // pred_check_branch
      %1006 = sbr.rel (0) target = $region29
    $region28: #{string_embedder_forward.1} parent=1 // pred_region
      %1007 = dma.done [#allocation4], 16
    $region29: #{string_embedder_forward.1} parent=1 // pred_fallthru
      _
    %1008 = vsyncpa [#allocation3], 1
    %1009 = vsyncpa [#allocation6], 1
    %1010 = vsyncpa [#allocation4], 1

</llo_original>
